<compile_context>
chip_gen: v5e
topology: v5e:2x2
jax: 0.10.0
libtpu: 0.0.40
codegen_flags: <defaults>
</compile_context>

<pallas_src>
import jax
import jax.numpy as jnp
from jax.experimental import pallas as pl
from jax.experimental.pallas import tpu as pltpu

B, C, H, W = 2, 4, 16, 16
HW = H * W
BHW = B * HW
CB = 32                                   # backbone feature width
N_AGE, N_GENDER, N_MASKED, N_EMO, N_EV = 8, 2, 2, 7, 2
N_HEADS = N_AGE + N_GENDER + N_MASKED + N_EMO          # 19


def _fused_kernel(x_ref, wbb_ref, wheads_ref, whm_ref, wev_ref,
                  bbb_ref, bhm_ref, bsmall_ref,
                  small_ref, hm_ref):
    # Activations are transposed: channels on sublanes, B*H*W (=512) on lanes.
    x = x_ref[...]                                                        # [C, BHW]

    # backbone: 1x1 conv + ReLU  ->  "body"
    body = jnp.dot(wbb_ref[...], x, preferred_element_type=jnp.float32)   # [CB, BHW]
    body = jnp.maximum(body + bbb_ref[...], 0.0)

    # global average pool per batch (each batch is one 256-lane segment) -> "feature"
    feat_cols = [jnp.sum(body[:, b * HW:(b + 1) * HW], axis=1, keepdims=True)
                 for b in range(B)]
    feat_t = jnp.concatenate(feat_cols, axis=1) * (1.0 / HW)              # [CB, B]

    # all four linear heads fused into one matmul
    heads_t = jnp.dot(wheads_ref[...], feat_t,
                      preferred_element_type=jnp.float32)                 # [N_HEADS, B]

    # emotion heatmap: 1x1 conv on body, lane-dense [N_EMO, BHW] output
    hm_t = jnp.dot(whm_ref[...], body,
                   preferred_element_type=jnp.float32) + bhm_ref[...]     # [N_EMO, BHW]
    hm_ref[...] = hm_t

    # emotion_value head on the NCHW-flattened heatmap, fused in-kernel:
    #   ev_t[n, b] = sum_{c,p} hm_t[c, b*HW + p] * w_ev[c*HW + p, n]
    ev_rows = []
    for n in range(N_EV):
        w_n = wev_ref[n, :, :]                                            # [N_EMO, HW]
        cols = []
        for b in range(B):
            prod = hm_t[:, b * HW:(b + 1) * HW] * w_n                     # [N_EMO, HW]
            s = jnp.sum(jnp.sum(prod, axis=1, keepdims=True),
                        axis=0, keepdims=True)                            # [1, 1]
            cols.append(s)
        ev_rows.append(jnp.concatenate(cols, axis=1))                     # [1, B]
    ev_t = jnp.concatenate(ev_rows, axis=0)                               # [N_EV, B]

    # one consolidated small-logits output: rows = age|gender|masked|emotion|ev
    small_ref[...] = jnp.concatenate([heads_t, ev_t], axis=0) + bsmall_ref[...]


def _vmem():
    return pl.BlockSpec(memory_space=pltpu.MemorySpace.VMEM)


def init_params(key):
    ks = jax.random.split(key, 14)
    def w(k, shape, scale=0.05):
        return scale * jax.random.normal(k, shape, dtype=jnp.float32)
    return {
        "w_bb":   w(ks[0],  (C, CB)),               "b_bb":   w(ks[1],  (1, CB)),
        "w_age":  w(ks[2],  (CB, N_AGE)),           "b_age":  w(ks[3],  (1, N_AGE)),
        "w_gen":  w(ks[4],  (CB, N_GENDER)),        "b_gen":  w(ks[5],  (1, N_GENDER)),
        "w_mask": w(ks[6],  (CB, N_MASKED)),        "b_mask": w(ks[7],  (1, N_MASKED)),
        "w_emo":  w(ks[8],  (CB, N_EMO)),           "b_emo":  w(ks[9],  (1, N_EMO)),
        "w_hm":   w(ks[10], (CB, N_EMO)),           "b_hm":   w(ks[11], (1, N_EMO)),
        "w_ev":   w(ks[12], (N_EMO * H * W, N_EV)), "b_ev":   w(ks[13], (1, N_EV)),
    }


@jax.jit
def forward(image, params):
    # image: NCHW [B, C, H, W] (PyTorch convention) -> [C, B*H*W] with the NCHW
    # spatial order (b*HW + h*W + w) on the lane axis.
    x_t = jnp.transpose(image, (1, 0, 2, 3)).reshape(C, BHW)

    # one-time (tiny) parameter re-packing inside the jit:
    w_bb_t = params["w_bb"].T                                             # [CB, C]
    w_heads_t = jnp.concatenate([params["w_age"], params["w_gen"],
                                 params["w_mask"], params["w_emo"]],
                                axis=1).T                                 # [N_HEADS, CB]
    w_hm_t = params["w_hm"].T                                             # [N_EMO, CB]
    # w_ev re-indexed so ev can be contracted against hm_t directly:
    #   w_ev3[n, c, p] = w_ev[c*HW + p, n]
    w_ev3 = params["w_ev"].reshape(N_EMO, HW, N_EV).transpose(2, 0, 1)    # [N_EV, N_EMO, HW]
    b_bb_col = params["b_bb"].T                                           # [CB, 1]
    b_hm_col = params["b_hm"].T                                           # [N_EMO, 1]
    b_small_col = jnp.concatenate([params["b_age"], params["b_gen"],
                                   params["b_mask"], params["b_emo"],
                                   params["b_ev"]], axis=1).T             # [N_HEADS+N_EV, 1]

    small_t, hm_t = pl.pallas_call(
        _fused_kernel,
        out_shape=(
            jax.ShapeDtypeStruct((N_HEADS + N_EV, B), jnp.float32),
            jax.ShapeDtypeStruct((N_EMO, BHW), jnp.float32),
        ),
        in_specs=[_vmem()] * 8,
        out_specs=(_vmem(), _vmem()),
    )(x_t, w_bb_t, w_heads_t, w_hm_t, w_ev3, b_bb_col, b_hm_col, b_small_col)

    small = small_t.T                                                     # [B, 21]
    age = small[:, 0:N_AGE]
    gender = small[:, N_AGE:N_AGE + N_GENDER]
    masked = small[:, N_AGE + N_GENDER:N_AGE + N_GENDER + N_MASKED]
    emotion = small[:, N_AGE + N_GENDER + N_MASKED:N_HEADS]
    ev = small[:, N_HEADS:N_HEADS + N_EV]
    # hm_t[c, b*HW + h*W + w]  ->  PyTorch NCHW heatmap [B, N_EMO, H, W]
    hm = jnp.transpose(hm_t.reshape(N_EMO, B, H, W), (1, 0, 2, 3))
    return age, gender, masked, emotion, ev, hm


def reference(image, params):
    # pure-JAX reference of the same forward, for correctness checking
    hp = jax.lax.Precision.HIGHEST
    x_flat = jnp.transpose(image, (0, 2, 3, 1)).reshape(BHW, C)
    body = jnp.maximum(jnp.dot(x_flat, params["w_bb"], precision=hp) + params["b_bb"], 0.0)
    feat = jnp.mean(body.reshape(B, HW, CB), axis=1)
    age = jnp.dot(feat, params["w_age"], precision=hp) + params["b_age"]
    gen = jnp.dot(feat, params["w_gen"], precision=hp) + params["b_gen"]
    mask = jnp.dot(feat, params["w_mask"], precision=hp) + params["b_mask"]
    emo = jnp.dot(feat, params["w_emo"], precision=hp) + params["b_emo"]
    hm_flat = jnp.dot(body, params["w_hm"], precision=hp) + params["b_hm"]
    hm = jnp.transpose(hm_flat.reshape(B, H, W, N_EMO), (0, 3, 1, 2))
    ev = jnp.dot(hm.reshape(B, -1), params["w_ev"], precision=hp) + params["b_ev"]
    return age, gen, mask, emo, ev, hm


if __name__ == "__main__":
    key = jax.random.PRNGKey(0)
    k_img, k_par = jax.random.split(key)
    image = jax.random.normal(k_img, (B, C, H, W), dtype=jnp.float32)
    params = init_params(k_par)

    outs = jax.block_until_ready(forward(image, params))
    refs = reference(image, params)
    for o, r in zip(outs, refs):
        assert o.shape == r.shape and o.dtype == r.dtype
        assert jnp.allclose(o, r, rtol=1e-4, atol=1e-4), float(jnp.max(jnp.abs(o - r)))

    print("KERNEL_OK")
</pallas_src>

<mosaic_0001>
module attributes {stable_mosaic.version = 11 : i64} {
  func.func @_fused_kernel(%arg0: memref<4x512xf32, #tpu.memory_space<vmem>>, %arg1: memref<32x4xf32, #tpu.memory_space<vmem>>, %arg2: memref<19x32xf32, #tpu.memory_space<vmem>>, %arg3: memref<7x32xf32, #tpu.memory_space<vmem>>, %arg4: memref<2x7x256xf32, #tpu.memory_space<vmem>>, %arg5: memref<32x1xf32, #tpu.memory_space<vmem>>, %arg6: memref<7x1xf32, #tpu.memory_space<vmem>>, %arg7: memref<21x1xf32, #tpu.memory_space<vmem>>, %arg8: memref<21x2xf32, #tpu.memory_space<vmem>>, %arg9: memref<7x512xf32, #tpu.memory_space<vmem>>) attributes {dimension_semantics = [], scalar_prefetch = 0 : i64, scratch_operands = 0 : i64, tpu.core_type = #tpu.core_type<tc>} {
    %c0 = arith.constant 0 : index
    %c0_0 = arith.constant 0 : index
    %0 = vector.load %arg0[%c0, %c0_0] : memref<4x512xf32, #tpu.memory_space<vmem>>, vector<4x512xf32>
    %c0_1 = arith.constant 0 : index
    %c0_2 = arith.constant 0 : index
    %1 = vector.load %arg1[%c0_1, %c0_2] : memref<32x4xf32, #tpu.memory_space<vmem>>, vector<32x4xf32>
    %cst = arith.constant dense<0.000000e+00> : vector<32x512xf32>
    %2 = tpu.matmul %1, %0, %cst {dimension_numbers = #tpu.dot_dimension_numbers<[1], [0], [0], [1], [0, 0, 1, 1], [], []>} : vector<32x4xf32>, vector<4x512xf32>, vector<32x512xf32> -> vector<32x512xf32>
    %c0_3 = arith.constant 0 : index
    %c0_4 = arith.constant 0 : index
    %3 = vector.load %arg5[%c0_3, %c0_4] : memref<32x1xf32, #tpu.memory_space<vmem>>, vector<32x1xf32>
    %4 = vector.broadcast %3 : vector<32x1xf32> to vector<32x512xf32>
    %5 = arith.addf %2, %4 : vector<32x512xf32>
    %cst_5 = arith.constant 0.000000e+00 : f32
    %6 = vector.broadcast %cst_5 : f32 to vector<32x512xf32>
    %7 = arith.maximumf %5, %6 : vector<32x512xf32>
    %8 = vector.extract_strided_slice %7 {offsets = [0, 0], sizes = [32, 256], strides = [1, 1]} : vector<32x512xf32> to vector<32x256xf32>
    %cst_6 = arith.constant dense<0.000000e+00> : vector<32xf32>
    %9 = vector.multi_reduction <add>, %8, %cst_6 [1] : vector<32x256xf32> to vector<32xf32>
    %10 = vector.shape_cast %9 : vector<32xf32> to vector<32x1xf32>
    %11 = vector.extract_strided_slice %7 {offsets = [0, 256], sizes = [32, 256], strides = [1, 1]} : vector<32x512xf32> to vector<32x256xf32>
    %cst_7 = arith.constant dense<0.000000e+00> : vector<32xf32>
    %12 = vector.multi_reduction <add>, %11, %cst_7 [1] : vector<32x256xf32> to vector<32xf32>
    %13 = vector.shape_cast %12 : vector<32xf32> to vector<32x1xf32>
    %14 = tpu.concatenate %10, %13 in 1 : vector<32x1xf32>, vector<32x1xf32> -> vector<32x2xf32>
    %cst_8 = arith.constant 3.906250e-03 : f32
    %15 = vector.broadcast %cst_8 : f32 to vector<32x2xf32>
    %16 = arith.mulf %14, %15 : vector<32x2xf32>
    %c0_9 = arith.constant 0 : index
    %c0_10 = arith.constant 0 : index
    %17 = vector.load %arg2[%c0_9, %c0_10] : memref<19x32xf32, #tpu.memory_space<vmem>>, vector<19x32xf32>
    %cst_11 = arith.constant dense<0.000000e+00> : vector<19x2xf32>
    %18 = tpu.matmul %17, %16, %cst_11 {dimension_numbers = #tpu.dot_dimension_numbers<[1], [0], [0], [1], [0, 0, 1, 1], [], []>} : vector<19x32xf32>, vector<32x2xf32>, vector<19x2xf32> -> vector<19x2xf32>
    %c0_12 = arith.constant 0 : index
    %c0_13 = arith.constant 0 : index
    %19 = vector.load %arg3[%c0_12, %c0_13] : memref<7x32xf32, #tpu.memory_space<vmem>>, vector<7x32xf32>
    %cst_14 = arith.constant dense<0.000000e+00> : vector<7x512xf32>
    %20 = tpu.matmul %19, %7, %cst_14 {dimension_numbers = #tpu.dot_dimension_numbers<[1], [0], [0], [1], [0, 0, 1, 1], [], []>} : vector<7x32xf32>, vector<32x512xf32>, vector<7x512xf32> -> vector<7x512xf32>
    %c0_15 = arith.constant 0 : index
    %c0_16 = arith.constant 0 : index
    %21 = vector.load %arg6[%c0_15, %c0_16] : memref<7x1xf32, #tpu.memory_space<vmem>>, vector<7x1xf32>
    %22 = vector.broadcast %21 : vector<7x1xf32> to vector<7x512xf32>
    %23 = arith.addf %20, %22 : vector<7x512xf32>
    %c0_17 = arith.constant 0 : index
    %c0_18 = arith.constant 0 : index
    %24 = vector.load %arg9[%c0_17, %c0_18] : memref<7x512xf32, #tpu.memory_space<vmem>>, vector<7x512xf32>
    tpu.vector_store %arg9[%c0_17, %c0_18], %23 {strides = array<i32>} : memref<7x512xf32, #tpu.memory_space<vmem>>, vector<7x512xf32>,
    %c0_19 = arith.constant 0 : index
    %c0_20 = arith.constant 0 : index
    %c0_21 = arith.constant 0 : index
    %25 = vector.load %arg4[%c0_19, %c0_20, %c0_21] : memref<2x7x256xf32, #tpu.memory_space<vmem>>, vector<1x7x256xf32>
    %26 = vector.shape_cast %25 : vector<1x7x256xf32> to vector<7x256xf32>
    %27 = vector.extract_strided_slice %23 {offsets = [0, 0], sizes = [7, 256], strides = [1, 1]} : vector<7x512xf32> to vector<7x256xf32>
    %28 = arith.mulf %27, %26 : vector<7x256xf32>
    %cst_22 = arith.constant dense<0.000000e+00> : vector<7xf32>
    %29 = vector.multi_reduction <add>, %28, %cst_22 [1] : vector<7x256xf32> to vector<7xf32>
    %30 = vector.shape_cast %29 : vector<7xf32> to vector<7x1xf32>
    %cst_23 = arith.constant dense<0.000000e+00> : vector<1xf32>
    %31 = vector.multi_reduction <add>, %30, %cst_23 [0] : vector<7x1xf32> to vector<1xf32>
    %32 = vector.shape_cast %31 : vector<1xf32> to vector<1x1xf32>
    %33 = vector.extract_strided_slice %23 {offsets = [0, 256], sizes = [7, 256], strides = [1, 1]} : vector<7x512xf32> to vector<7x256xf32>
    %34 = arith.mulf %33, %26 : vector<7x256xf32>
    %cst_24 = arith.constant dense<0.000000e+00> : vector<7xf32>
    %35 = vector.multi_reduction <add>, %34, %cst_24 [1] : vector<7x256xf32> to vector<7xf32>
    %36 = vector.shape_cast %35 : vector<7xf32> to vector<7x1xf32>
    %cst_25 = arith.constant dense<0.000000e+00> : vector<1xf32>
    %37 = vector.multi_reduction <add>, %36, %cst_25 [0] : vector<7x1xf32> to vector<1xf32>
    %38 = vector.shape_cast %37 : vector<1xf32> to vector<1x1xf32>
    %39 = tpu.concatenate %32, %38 in 1 : vector<1x1xf32>, vector<1x1xf32> -> vector<1x2xf32>
    %c1 = arith.constant 1 : index
    %c0_26 = arith.constant 0 : index
    %c0_27 = arith.constant 0 : index
    %40 = vector.load %arg4[%c1, %c0_26, %c0_27] : memref<2x7x256xf32, #tpu.memory_space<vmem>>, vector<1x7x256xf32>
    %41 = vector.shape_cast %40 : vector<1x7x256xf32> to vector<7x256xf32>
    %42 = vector.extract_strided_slice %23 {offsets = [0, 0], sizes = [7, 256], strides = [1, 1]} : vector<7x512xf32> to vector<7x256xf32>
    %43 = arith.mulf %42, %41 : vector<7x256xf32>
    %cst_28 = arith.constant dense<0.000000e+00> : vector<7xf32>
    %44 = vector.multi_reduction <add>, %43, %cst_28 [1] : vector<7x256xf32> to vector<7xf32>
    %45 = vector.shape_cast %44 : vector<7xf32> to vector<7x1xf32>
    %cst_29 = arith.constant dense<0.000000e+00> : vector<1xf32>
    %46 = vector.multi_reduction <add>, %45, %cst_29 [0] : vector<7x1xf32> to vector<1xf32>
    %47 = vector.shape_cast %46 : vector<1xf32> to vector<1x1xf32>
    %48 = vector.extract_strided_slice %23 {offsets = [0, 256], sizes = [7, 256], strides = [1, 1]} : vector<7x512xf32> to vector<7x256xf32>
    %49 = arith.mulf %48, %41 : vector<7x256xf32>
    %cst_30 = arith.constant dense<0.000000e+00> : vector<7xf32>
    %50 = vector.multi_reduction <add>, %49, %cst_30 [1] : vector<7x256xf32> to vector<7xf32>
    %51 = vector.shape_cast %50 : vector<7xf32> to vector<7x1xf32>
    %cst_31 = arith.constant dense<0.000000e+00> : vector<1xf32>
    %52 = vector.multi_reduction <add>, %51, %cst_31 [0] : vector<7x1xf32> to vector<1xf32>
    %53 = vector.shape_cast %52 : vector<1xf32> to vector<1x1xf32>
    %54 = tpu.concatenate %47, %53 in 1 : vector<1x1xf32>, vector<1x1xf32> -> vector<1x2xf32>
    %55 = tpu.concatenate %39, %54 in 0 : vector<1x2xf32>, vector<1x2xf32> -> vector<2x2xf32>
    %56 = tpu.concatenate %18, %55 in 0 : vector<19x2xf32>, vector<2x2xf32> -> vector<21x2xf32>
    %c0_32 = arith.constant 0 : index
    %c0_33 = arith.constant 0 : index
    %57 = vector.load %arg7[%c0_32, %c0_33] : memref<21x1xf32, #tpu.memory_space<vmem>>, vector<21x1xf32>
    %58 = vector.broadcast %57 : vector<21x1xf32> to vector<21x2xf32>
    %59 = arith.addf %56, %58 : vector<21x2xf32>
    %c0_34 = arith.constant 0 : index
    %c0_35 = arith.constant 0 : index
    %60 = vector.load %arg8[%c0_34, %c0_35] : memref<21x2xf32, #tpu.memory_space<vmem>>, vector<21x2xf32>
    tpu.vector_store %arg8[%c0_34, %c0_35], %59 {strides = array<i32>} : memref<21x2xf32, #tpu.memory_space<vmem>>, vector<21x2xf32>,
    return
  }
}

</mosaic_0001>

<llo_original>
// kernel: forward.1
$region0: #{forward.1}
  #allocation0 [shape = 'u32[]', space=smem, size = 0x4, offset = 0x4, fixed_abs, tag = 'smem constant byte address 0x4 - core index']
  #allocation1 [shape = 'u32[72,128]{1,0:T(1,128)}', space=vmem, size = 0x9000, scoped, tag = 'internal scratch']
  %s0 = inlined_call_operand.vmem [shape: f32[4,512], index: 0, kind: input, shape index: {}]
  %s1 = inlined_call_operand.vmem [shape: f32[32,4], index: 1, kind: input, shape index: {}]
  %s2 = inlined_call_operand.vmem [shape: f32[19,32], index: 2, kind: input, shape index: {}]
  %s3 = inlined_call_operand.vmem [shape: f32[7,32], index: 3, kind: input, shape index: {}]
  %s4 = inlined_call_operand.vmem [shape: f32[2,7,256], index: 4, kind: input, shape index: {}]
  %s5 = inlined_call_operand.vmem [shape: f32[32,1], index: 5, kind: input, shape index: {}]
  %s6 = inlined_call_operand.vmem [shape: f32[7,1], index: 6, kind: input, shape index: {}]
  %s7 = inlined_call_operand.vmem [shape: f32[21,1], index: 7, kind: input, shape index: {}]
  %s8 = inlined_call_operand.vmem [shape: f32[21,2], index: 8, kind: output, shape index: {0}]
  %s9 = inlined_call_operand.vmem [shape: f32[7,512], index: 9, kind: output, shape index: {1}]
  %10 = xla_tuple %s8, %s9
  %s11 = sld [smem:[#allocation0]]
  $region50: #{forward.1} parent=0
    _
  %s13 = ssub.s32 1, %s11
  %s14 = scalar_select 0, %s13, %s11
  // Predicated region
  $region2: #{forward.1} parent=0 // pred_check
    _
  $region3: #{forward.1} parent=0 // pred_check_branch
    %16 = sbr.rel (0) target = $region5
  $region4: #{forward.1} parent=0 // pred_region
    _
  $region5: #{forward.1} parent=0 // pred_fallthru
    _
  // Predicated region
  $region6: #{forward.1} parent=0 // pred_check
    _
  $region7: #{forward.1} parent=0 // pred_check_branch
    %18 = sbr.rel (0) target = $region9
  $region8: #{forward.1} parent=0 // pred_region
    _
  $region9: #{forward.1} parent=0 // pred_fallthru
    _
  // Predicated region
  $region10: #{forward.1} parent=0 // pred_check
    _
  $region11: #{forward.1} parent=0 // pred_check_branch
    %20 = sbr.rel (0) target = $region13
  $region12: #{forward.1} parent=0 // pred_region
    _
  $region13: #{forward.1} parent=0 // pred_fallthru
    _
  // Predicated region
  $region14: #{forward.1} parent=0 // pred_check
    _
  $region15: #{forward.1} parent=0 // pred_check_branch
    %22 = sbr.rel (0) target = $region17
  $region16: #{forward.1} parent=0 // pred_region
    _
  $region17: #{forward.1} parent=0 // pred_fallthru
    _
  // Predicated region
  $region18: #{forward.1} parent=0 // pred_check
    _
  $region19: #{forward.1} parent=0 // pred_check_branch
    %24 = sbr.rel (0) target = $region21
  $region20: #{forward.1} parent=0 // pred_region
    _
  $region21: #{forward.1} parent=0 // pred_fallthru
    _
  // Predicated region
  $region22: #{forward.1} parent=0 // pred_check
    _
  $region23: #{forward.1} parent=0 // pred_check_branch
    %26 = sbr.rel (0) target = $region25
  $region24: #{forward.1} parent=0 // pred_region
    _
  $region25: #{forward.1} parent=0 // pred_fallthru
    _
  // Predicated region
  $region26: #{forward.1} parent=0 // pred_check
    _
  $region27: #{forward.1} parent=0 // pred_check_branch
    %28 = sbr.rel (0) target = $region29
  $region28: #{forward.1} parent=0 // pred_region
    _
  $region29: #{forward.1} parent=0 // pred_fallthru
    _
  // Predicated region
  $region30: #{forward.1} parent=0 // pred_check
    _
  $region31: #{forward.1} parent=0 // pred_check_branch
    %30 = sbr.rel (0) target = $region33
  $region32: #{forward.1} parent=0 // pred_region
    _
  $region33: #{forward.1} parent=0 // pred_fallthru
    _
  %v31 = vld [vmem:[%s0] sm:$0xff]
  %v32 = vld [vmem:[%s0 + $0x8] sm:$0xff]
  %v33 = vld [vmem:[%s1] sm:$0xff]
  %v34 = vld [vmem:[%s1 + $0x8] sm:$0xff]
  %v35 = vld [vmem:[%s1 + $0x10] sm:$0xff]
  %v36 = vld [vmem:[%s1 + $0x18] sm:$0xff]
  %v37 = vld [vmem:[%s5] sm:$0xff]
  %v38 = vld [vmem:[%s5 + $0x8] sm:$0xff]
  %v39 = vld [vmem:[%s5 + $0x10] sm:$0xff]
  %v40 = vld [vmem:[%s5 + $0x18] sm:$0xff]
  %42 = vset.pattern.permute.xlu0 0
  %43 = vperm.xlu0 %42, %v37
  %v44 = vpop.permute.xlu0 %43
  %47 = vset.pattern.permute.xlu0 0
  %48 = vperm.xlu0 %47, %v38
  %v49 = vpop.permute.xlu0 %48
  %52 = vset.pattern.permute.xlu0 0
  %53 = vperm.xlu0 %52, %v39
  %v54 = vpop.permute.xlu0 %53
  %57 = vset.pattern.permute.xlu0 0
  %58 = vperm.xlu0 %57, %v40
  %v59 = vpop.permute.xlu0 %58
  %63 = vst [vmem:[#allocation1] ss:$2 sm:$0xff] %v31
  %s64 = scalar_lea.vmem [#allocation1], 16
  %65 = vst [vmem:[%s64] ss:$2 sm:$0xff] %v32
  %v66 = vld.sshfl [vmem:[#allocation1] sm:$0xff pattern:$0x75316420]
  %v67 = vld.sshfl [vmem:[#allocation1 + $0x8] sm:$0xff pattern:$0x75316420]
  %v68 = vld.sshfl [vmem:[#allocation1 + $0x10] sm:$0xff pattern:$0x75316420]
  %v69 = vld.sshfl [vmem:[#allocation1 + $0x18] sm:$0xff pattern:$0x75316420]
  %vm70 = vcmask 31744
  %v72 = vsel %vm70, %v33, 0
  %v75 = vsel %vm70, %v34, 0
  %v78 = vsel %vm70, %v35, 0
  %v81 = vsel %vm70, %v36, 0
  %vm83 = vcmask 1043456
  %v84 = vsel %vm83, %v66, 0
  %v86 = vsel %vm83, %v67, 0
  %v88 = vsel %vm83, %v68, 0
  %v90 = vsel %vm83, %v69, 0
  %92 = vmatpush.msra.mxu0 0.0
  %93 = vmatpush.msra.mxu0 0.0
  %94 = vmatpush.msra.mxu0 0.0
  %95 = vmatpush.msra.mxu0 0.0
  %96 = vmatpush.msra.mxu0 0.0
  %97 = vmatpush.msra.mxu0 0.0
  %98 = vmatpush.msra.mxu0 0.0
  %99 = vmatpush.msra.mxu0 0.0
  %100 = vmatpush.msra.mxu0 0.0
  %101 = vmatpush.msra.mxu0 0.0
  %102 = vmatpush.msra.mxu0 0.0
  %103 = vmatpush.msra.mxu0 0.0
  %104 = vmatpush.msra.mxu0 0.0
  %105 = vmatpush.msra.mxu0 0.0
  %106 = vmatpush.msra.mxu0 0.0
  %107 = vmatpush.msra.mxu0 %v84
  %108 = vmatmul.f32.gmra.mxu0 %v72
  %v109 = vpop.f32.mrf.mxu0
  %v110 = vadd.f32 %v44, %v109
  %111 = vmatmul.f32.gmra.mxu0 %v75
  %v112 = vpop.f32.mrf.mxu0
  %v113 = vadd.f32 %v49, %v112
  %114 = vmatmul.f32.gmra.mxu0 %v78
  %v115 = vpop.f32.mrf.mxu0
  %v116 = vadd.f32 %v54, %v115
  %117 = vmatmul.f32.gmra.mxu0 %v81
  %v118 = vpop.f32.mrf.mxu0
  %v119 = vadd.f32 %v59, %v118
  %120 = vdwg.mxu0
  %121 = vmatpush.msra.mxu0 0.0
  %122 = vmatpush.msra.mxu0 0.0
  %123 = vmatpush.msra.mxu0 0.0
  %124 = vmatpush.msra.mxu0 0.0
  %125 = vmatpush.msra.mxu0 0.0
  %126 = vmatpush.msra.mxu0 0.0
  %127 = vmatpush.msra.mxu0 0.0
  %128 = vmatpush.msra.mxu0 0.0
  %129 = vmatpush.msra.mxu0 0.0
  %130 = vmatpush.msra.mxu0 0.0
  %131 = vmatpush.msra.mxu0 0.0
  %132 = vmatpush.msra.mxu0 0.0
  %133 = vmatpush.msra.mxu0 0.0
  %134 = vmatpush.msra.mxu0 0.0
  %135 = vmatpush.msra.mxu0 0.0
  %136 = vmatpush.msra.mxu0 %v86
  %137 = vmatmul.f32.gmra.mxu0 %v72
  %v138 = vpop.f32.mrf.mxu0
  %v139 = vadd.f32 %v44, %v138
  %140 = vmatmul.f32.gmra.mxu0 %v75
  %v141 = vpop.f32.mrf.mxu0
  %v142 = vadd.f32 %v49, %v141
  %143 = vmatmul.f32.gmra.mxu0 %v78
  %v144 = vpop.f32.mrf.mxu0
  %v145 = vadd.f32 %v54, %v144
  %146 = vmatmul.f32.gmra.mxu0 %v81
  %v147 = vpop.f32.mrf.mxu0
  %v148 = vadd.f32 %v59, %v147
  %149 = vdwg.mxu0
  %150 = vmatpush.msra.mxu0 0.0
  %151 = vmatpush.msra.mxu0 0.0
  %152 = vmatpush.msra.mxu0 0.0
  %153 = vmatpush.msra.mxu0 0.0
  %154 = vmatpush.msra.mxu0 0.0
  %155 = vmatpush.msra.mxu0 0.0
  %156 = vmatpush.msra.mxu0 0.0
  %157 = vmatpush.msra.mxu0 0.0
  %158 = vmatpush.msra.mxu0 0.0
  %159 = vmatpush.msra.mxu0 0.0
  %160 = vmatpush.msra.mxu0 0.0
  %161 = vmatpush.msra.mxu0 0.0
  %162 = vmatpush.msra.mxu0 0.0
  %163 = vmatpush.msra.mxu0 0.0
  %164 = vmatpush.msra.mxu0 0.0
  %165 = vmatpush.msra.mxu0 %v88
  %166 = vmatmul.f32.gmra.mxu0 %v72
  %v167 = vpop.f32.mrf.mxu0
  %v168 = vadd.f32 %v44, %v167
  %169 = vmatmul.f32.gmra.mxu0 %v75
  %v170 = vpop.f32.mrf.mxu0
  %v171 = vadd.f32 %v49, %v170
  %172 = vmatmul.f32.gmra.mxu0 %v78
  %v173 = vpop.f32.mrf.mxu0
  %v174 = vadd.f32 %v54, %v173
  %175 = vmatmul.f32.gmra.mxu0 %v81
  %v176 = vpop.f32.mrf.mxu0
  %v177 = vadd.f32 %v59, %v176
  %178 = vdwg.mxu0
  %179 = vmatpush.msra.mxu0 0.0
  %180 = vmatpush.msra.mxu0 0.0
  %181 = vmatpush.msra.mxu0 0.0
  %182 = vmatpush.msra.mxu0 0.0
  %183 = vmatpush.msra.mxu0 0.0
  %184 = vmatpush.msra.mxu0 0.0
  %185 = vmatpush.msra.mxu0 0.0
  %186 = vmatpush.msra.mxu0 0.0
  %187 = vmatpush.msra.mxu0 0.0
  %188 = vmatpush.msra.mxu0 0.0
  %189 = vmatpush.msra.mxu0 0.0
  %190 = vmatpush.msra.mxu0 0.0
  %191 = vmatpush.msra.mxu0 0.0
  %192 = vmatpush.msra.mxu0 0.0
  %193 = vmatpush.msra.mxu0 0.0
  %194 = vmatpush.msra.mxu0 %v90
  %195 = vmatmul.f32.gmra.mxu0 %v72
  %v196 = vpop.f32.mrf.mxu0
  %v197 = vadd.f32 %v44, %v196
  %198 = vmatmul.f32.gmra.mxu0 %v75
  %v199 = vpop.f32.mrf.mxu0
  %v200 = vadd.f32 %v49, %v199
  %201 = vmatmul.f32.gmra.mxu0 %v78
  %v202 = vpop.f32.mrf.mxu0
  %v203 = vadd.f32 %v54, %v202
  %204 = vmatmul.f32.gmra.mxu0 %v81
  %v205 = vpop.f32.mrf.mxu0
  %v206 = vadd.f32 %v59, %v205
  %207 = vdwg.mxu0
  %v208 = vmax.f32 %v110, 0.0
  %v209 = vmax.f32 %v139, 0.0
  %v210 = vmax.f32 %v168, 0.0
  %v211 = vmax.f32 %v197, 0.0
  %v212 = vmax.f32 %v113, 0.0
  %v213 = vmax.f32 %v142, 0.0
  %v214 = vmax.f32 %v171, 0.0
  %v215 = vmax.f32 %v200, 0.0
  %v216 = vmax.f32 %v116, 0.0
  %v217 = vmax.f32 %v145, 0.0
  %v218 = vmax.f32 %v174, 0.0
  %v219 = vmax.f32 %v203, 0.0
  %v220 = vmax.f32 %v119, 0.0
  %v221 = vmax.f32 %v148, 0.0
  %v222 = vmax.f32 %v177, 0.0
  %v223 = vmax.f32 %v206, 0.0
  %v224 = vadd.f32 %v208, %v209
  %225 = vadd.xlane.f32.xlu0 %v224
  %v226 = vpop.xlane.xlu0 %225
  %v227 = vadd.f32 %v212, %v213
  %228 = vadd.xlane.f32.xlu0 %v227
  %v229 = vpop.xlane.xlu0 %228
  %v230 = vadd.f32 %v216, %v217
  %231 = vadd.xlane.f32.xlu0 %v230
  %v232 = vpop.xlane.xlu0 %231
  %v233 = vadd.f32 %v220, %v221
  %234 = vadd.xlane.f32.xlu0 %v233
  %v235 = vpop.xlane.xlu0 %234
  %v236 = vadd.f32 %v210, %v211
  %237 = vadd.xlane.f32.xlu0 %v236
  %v238 = vpop.xlane.xlu0 %237
  %v239 = vadd.f32 %v214, %v215
  %240 = vadd.xlane.f32.xlu0 %v239
  %v241 = vpop.xlane.xlu0 %240
  %v242 = vadd.f32 %v218, %v219
  %243 = vadd.xlane.f32.xlu0 %v242
  %v244 = vpop.xlane.xlu0 %243
  %v245 = vadd.f32 %v222, %v223
  %246 = vadd.xlane.f32.xlu0 %v245
  %v247 = vpop.xlane.xlu0 %246
  %vm248 = vcmask 7168
  %v249 = vsel %vm248, %v226, %v238
  %v250 = vsel %vm248, %v229, %v241
  %v251 = vsel %vm248, %v232, %v244
  %v252 = vsel %vm248, %v235, %v247
  %v253 = vmul.f32 %v249, 0.00390625
  %v254 = vmul.f32 %v250, 0.00390625
  %v255 = vmul.f32 %v251, 0.00390625
  %v256 = vmul.f32 %v252, 0.00390625
  %v257 = vld [vmem:[%s2] sm:$0xff]
  %v258 = vld [vmem:[%s2 + $0x8] sm:$0xff]
  %v259 = vld [vmem:[%s2 + $0x10] sm:$0x7]
  %vm260 = vcmask 261120
  %v262 = vsel %vm260, %v257, 0
  %v265 = vsel %vm260, %v258, 0
  %v268 = vsel %vm260, %v259, 0
  %270 = vmatpush.msra.mxu0 0.0
  %271 = vmatpush.msra.mxu0 0.0
  %272 = vmatpush.msra.mxu0 0.0
  %273 = vmatpush.msra.mxu0 0.0
  %274 = vmatpush.msra.mxu0 0.0
  %275 = vmatpush.msra.mxu0 0.0
  %276 = vmatpush.msra.mxu0 0.0
  %277 = vmatpush.msra.mxu0 0.0
  %278 = vmatpush.msra.mxu0 0.0
  %279 = vmatpush.msra.mxu0 0.0
  %280 = vmatpush.msra.mxu0 0.0
  %281 = vmatpush.msra.mxu0 0.0
  %282 = vmatpush.msra.mxu0 %v256
  %283 = vmatpush.msra.mxu0 %v255
  %284 = vmatpush.msra.mxu0 %v254
  %285 = vmatpush.msra.mxu0 %v253
  %286 = vmatmul.f32.gmra.mxu0 %v262
  %v287 = vpop.f32.mrf.mxu0
  %v288 = vadd.f32 0.0, %v287
  %289 = vmatmul.f32.gmra.mxu0 %v265
  %v290 = vpop.f32.mrf.mxu0
  %v291 = vadd.f32 0.0, %v290
  %292 = vmatmul.f32.gmra.mxu0 %v268
  %v293 = vpop.f32.mrf.mxu0
  %v294 = vadd.f32 0.0, %v293
  %295 = vdwg.mxu0
  %v296 = vld [vmem:[%s3] sm:$0x7f]
  %v297 = vld [vmem:[%s6] sm:$0x7f]
  %299 = vset.pattern.permute.xlu0 0
  %300 = vperm.xlu0 %299, %v297
  %v301 = vpop.permute.xlu0 %300
  %v304 = vsel %vm260, %v296, 0
  %306 = vmatpush.msra.mxu0 0.0
  %307 = vmatpush.msra.mxu0 0.0
  %308 = vmatpush.msra.mxu0 0.0
  %309 = vmatpush.msra.mxu0 0.0
  %310 = vmatpush.msra.mxu0 0.0
  %311 = vmatpush.msra.mxu0 0.0
  %312 = vmatpush.msra.mxu0 0.0
  %313 = vmatpush.msra.mxu0 0.0
  %314 = vmatpush.msra.mxu0 0.0
  %315 = vmatpush.msra.mxu0 0.0
  %316 = vmatpush.msra.mxu0 0.0
  %317 = vmatpush.msra.mxu0 0.0
  %318 = vmatpush.msra.mxu0 %v220
  %319 = vmatpush.msra.mxu0 %v216
  %320 = vmatpush.msra.mxu0 %v212
  %321 = vmatpush.msra.mxu0 %v208
  %322 = vmatmul.f32.gmra.mxu0 %v304
  %v323 = vpop.f32.mrf.mxu0
  %v324 = vadd.f32 %v301, %v323
  %325 = vdwg.mxu0
  %326 = vmatpush.msra.mxu0 0.0
  %327 = vmatpush.msra.mxu0 0.0
  %328 = vmatpush.msra.mxu0 0.0
  %329 = vmatpush.msra.mxu0 0.0
  %330 = vmatpush.msra.mxu0 0.0
  %331 = vmatpush.msra.mxu0 0.0
  %332 = vmatpush.msra.mxu0 0.0
  %333 = vmatpush.msra.mxu0 0.0
  %334 = vmatpush.msra.mxu0 0.0
  %335 = vmatpush.msra.mxu0 0.0
  %336 = vmatpush.msra.mxu0 0.0
  %337 = vmatpush.msra.mxu0 0.0
  %338 = vmatpush.msra.mxu0 %v221
  %339 = vmatpush.msra.mxu0 %v217
  %340 = vmatpush.msra.mxu0 %v213
  %341 = vmatpush.msra.mxu0 %v209
  %342 = vmatmul.f32.gmra.mxu0 %v304
  %v343 = vpop.f32.mrf.mxu0
  %v344 = vadd.f32 %v301, %v343
  %345 = vdwg.mxu0
  %346 = vmatpush.msra.mxu0 0.0
  %347 = vmatpush.msra.mxu0 0.0
  %348 = vmatpush.msra.mxu0 0.0
  %349 = vmatpush.msra.mxu0 0.0
  %350 = vmatpush.msra.mxu0 0.0
  %351 = vmatpush.msra.mxu0 0.0
  %352 = vmatpush.msra.mxu0 0.0
  %353 = vmatpush.msra.mxu0 0.0
  %354 = vmatpush.msra.mxu0 0.0
  %355 = vmatpush.msra.mxu0 0.0
  %356 = vmatpush.msra.mxu0 0.0
  %357 = vmatpush.msra.mxu0 0.0
  %358 = vmatpush.msra.mxu0 %v222
  %359 = vmatpush.msra.mxu0 %v218
  %360 = vmatpush.msra.mxu0 %v214
  %361 = vmatpush.msra.mxu0 %v210
  %362 = vmatmul.f32.gmra.mxu0 %v304
  %v363 = vpop.f32.mrf.mxu0
  %v364 = vadd.f32 %v301, %v363
  %365 = vdwg.mxu0
  %366 = vmatpush.msra.mxu0 0.0
  %367 = vmatpush.msra.mxu0 0.0
  %368 = vmatpush.msra.mxu0 0.0
  %369 = vmatpush.msra.mxu0 0.0
  %370 = vmatpush.msra.mxu0 0.0
  %371 = vmatpush.msra.mxu0 0.0
  %372 = vmatpush.msra.mxu0 0.0
  %373 = vmatpush.msra.mxu0 0.0
  %374 = vmatpush.msra.mxu0 0.0
  %375 = vmatpush.msra.mxu0 0.0
  %376 = vmatpush.msra.mxu0 0.0
  %377 = vmatpush.msra.mxu0 0.0
  %378 = vmatpush.msra.mxu0 %v223
  %379 = vmatpush.msra.mxu0 %v219
  %380 = vmatpush.msra.mxu0 %v215
  %381 = vmatpush.msra.mxu0 %v211
  %382 = vmatmul.f32.gmra.mxu0 %v304
  %v383 = vpop.f32.mrf.mxu0
  %v384 = vadd.f32 %v301, %v383
  %385 = vdwg.mxu0
  %386 = vst [vmem:[%s9] sm:$0x7f] %v324
  %387 = vst [vmem:[%s9 + $0x8] sm:$0x7f] %v344
  %388 = vst [vmem:[%s9 + $0x10] sm:$0x7f] %v364
  %389 = vst [vmem:[%s9 + $0x18] sm:$0x7f] %v384
  %v390 = vld [vmem:[%s4] sm:$0x7f]
  %v391 = vld [vmem:[%s4 + $0x8] sm:$0x7f]
  %v392 = vmul.f32 %v324, %v390
  %v393 = vmul.f32 %v344, %v391
  %vm394 = vcmask 1046528
  %v395 = vsel %vm394, %v392, 0.0
  %v396 = vsel %vm394, %v393, 0.0
  %v397 = vadd.f32 %v395, %v396
  %398 = vadd.xlane.f32.xlu0 %v397
  %v399 = vpop.xlane.xlu0 %398
  %v400 = vsel %vm394, %v399, 0.0
  %v401 = vrot.slane %v400, 4
  %v402 = vadd.f32 %v400, %v401
  %v403 = vrot.slane %v402, 2
  %v404 = vadd.f32 %v402, %v403
  %v405 = vrot.slane %v404, 1
  %v406 = vadd.f32 %v404, %v405
  %v407 = vmul.f32 %v364, %v390
  %v408 = vmul.f32 %v384, %v391
  %v409 = vsel %vm394, %v407, 0.0
  %v410 = vsel %vm394, %v408, 0.0
  %v411 = vadd.f32 %v409, %v410
  %412 = vadd.xlane.f32.xlu0 %v411
  %v413 = vpop.xlane.xlu0 %412
  %v414 = vsel %vm394, %v413, 0.0
  %v415 = vrot.slane %v414, 4
  %v416 = vadd.f32 %v414, %v415
  %v417 = vrot.slane %v416, 2
  %v418 = vadd.f32 %v416, %v417
  %v419 = vrot.slane %v418, 1
  %v420 = vadd.f32 %v418, %v419
  %v421 = vsel %vm248, %v406, %v420
  %s422 = scalar_lea.vmem %s4, 16
  %v423 = vld [vmem:[%s422] sm:$0x7f]
  %v424 = vld [vmem:[%s422 + $0x8] sm:$0x7f]
  %v425 = vmul.f32 %v324, %v423
  %v426 = vmul.f32 %v344, %v424
  %v427 = vsel %vm394, %v425, 0.0
  %v428 = vsel %vm394, %v426, 0.0
  %v429 = vadd.f32 %v427, %v428
  %430 = vadd.xlane.f32.xlu0 %v429
  %v431 = vpop.xlane.xlu0 %430
  %v432 = vsel %vm394, %v431, 0.0
  %v433 = vrot.slane %v432, 4
  %v434 = vadd.f32 %v432, %v433
  %v435 = vrot.slane %v434, 2
  %v436 = vadd.f32 %v434, %v435
  %v437 = vrot.slane %v436, 1
  %v438 = vadd.f32 %v436, %v437
  %v439 = vmul.f32 %v364, %v423
  %v440 = vmul.f32 %v384, %v424
  %v441 = vsel %vm394, %v439, 0.0
  %v442 = vsel %vm394, %v440, 0.0
  %v443 = vadd.f32 %v441, %v442
  %444 = vadd.xlane.f32.xlu0 %v443
  %v445 = vpop.xlane.xlu0 %444
  %v446 = vsel %vm394, %v445, 0.0
  %v447 = vrot.slane %v446, 4
  %v448 = vadd.f32 %v446, %v447
  %v449 = vrot.slane %v448, 2
  %v450 = vadd.f32 %v448, %v449
  %v451 = vrot.slane %v450, 1
  %v452 = vadd.f32 %v450, %v451
  %v453 = vsel %vm248, %v438, %v452
  %v455 = vrot.slane %v453, 7
  %vm457 = vcmask 1040384
  %v458 = vsel %vm457, %v421, %v455
  %v460 = vrot.slane %v458, 5
  %vm462 = vcmask 1042432
  %v463 = vsel %vm462, %v294, %v460
  %v464 = vld [vmem:[%s7] sm:$0xff]
  %v465 = vld [vmem:[%s7 + $0x8] sm:$0xff]
  %v466 = vld [vmem:[%s7 + $0x10] sm:$0x1f]
  %468 = vset.pattern.permute.xlu0 0
  %469 = vperm.xlu0 %468, %v464
  %v470 = vpop.permute.xlu0 %469
  %473 = vset.pattern.permute.xlu0 0
  %474 = vperm.xlu0 %473, %v465
  %v475 = vpop.permute.xlu0 %474
  %478 = vset.pattern.permute.xlu0 0
  %479 = vperm.xlu0 %478, %v466
  %v480 = vpop.permute.xlu0 %479
  %v482 = vadd.f32 %v288, %v470
  %v483 = vadd.f32 %v291, %v475
  %v484 = vadd.f32 %v463, %v480
  %vm485 = vcmask 15360
  %486 = vst.msk [vmem:[%s8] sm:$0xff] %vm485, %v482
  %487 = vst.msk [vmem:[%s8 + $0x8] sm:$0xff] %vm485, %v483
  %vm488 = vcmask 12288
  %489 = vst.msk [vmem:[%s8 + $0x10] sm:$0x1f] %vm488, %v484
  // Predicated region
  $region34: #{forward.1} parent=0 // pred_check
    _
  $region35: #{forward.1} parent=0 // pred_check_branch
    %491 = sbr.rel (0) target = $region37
  $region36: #{forward.1} parent=0 // pred_region
    _
  $region37: #{forward.1} parent=0 // pred_fallthru
    _
  // Predicated region
  $region38: #{forward.1} parent=0 // pred_check
    _
  $region39: #{forward.1} parent=0 // pred_check_branch
    %493 = sbr.rel (0) target = $region41
  $region40: #{forward.1} parent=0 // pred_region
    _
  $region41: #{forward.1} parent=0 // pred_fallthru
    _
  // Predicated region
  $region42: #{forward.1} parent=0 // pred_check
    _
  $region43: #{forward.1} parent=0 // pred_check_branch
    %495 = sbr.rel (0) target = $region45
  $region44: #{forward.1} parent=0 // pred_region
    _
  $region45: #{forward.1} parent=0 // pred_fallthru
    _
  // Predicated region
  $region46: #{forward.1} parent=0 // pred_check
    _
  $region47: #{forward.1} parent=0 // pred_check_branch
    %497 = sbr.rel (0) target = $region49
  $region48: #{forward.1} parent=0 // pred_region
    _
  $region49: #{forward.1} parent=0 // pred_fallthru
    _

</llo_original>
